<compile_context>
chip_gen: v7x
topology: tpu7x:2x2x1
jax: 0.10.0
libtpu: 0.0.40
codegen_flags: <defaults>
</compile_context>

<pallas_src>
import jax
import jax.numpy as jnp
from jax.experimental import pallas as pl
from jax.experimental.pallas import tpu as pltpu


def _round_up(v, m):
    return ((v + m - 1) // m) * m


def _cdiv(a, b):
    return (a + b - 1) // b


def _vmem_budget():
    """Returns (planning budget for our buffers, cap for vmem_limit_bytes)."""
    try:
        cap = int(pltpu.get_tpu_info().vmem_capacity_bytes)
    except Exception:
        cap = 64 << 20  # conservative default (v7x-sized)
    if cap >= (96 << 20):              # v5e / v6e: 128 MiB VMEM
        return 100 << 20, 116 << 20
    return 46 << 20, 56 << 20          # v7x: 64 MiB VMEM per TensorCore


# ---------------------------------------------------------------------------
# Kernels
# ---------------------------------------------------------------------------

def _resident_kernel(x_ref, w1_ref, w2_ref, o_ref):
    # x_ref : [TM, D_in_p]   batch tile, pipelined over grid axis 0
    # w1_ref: [D_in_p, H_p]  pre-transposed weight, resident (single-buffered)
    # w2_ref: [H_p, D_out_p] pre-transposed weight, resident (single-buffered)
    h = jnp.dot(x_ref[...], w1_ref[...], preferred_element_type=jnp.float32)
    h = jnp.maximum(h, 0.0)                                    # .clamp(min=0)
    y = jnp.dot(h.astype(w2_ref.dtype), w2_ref[...],
                preferred_element_type=jnp.float32)
    o_ref[...] = y.astype(o_ref.dtype)


def _hsplit_kernel(x_ref, w1_ref, w2_ref, o_ref, acc_ref):
    # Reduction over H tiles: grid = (batch tiles, H tiles), H axis last
    # ("arbitrary").  ReLU distributes over H slices, so per-slice
    # relu(x @ w1[:, h]) @ w2[h, :] sums to the exact result.
    hi = pl.program_id(1)

    @pl.when(hi == 0)
    def _():
        acc_ref[...] = jnp.zeros_like(acc_ref)

    h = jnp.dot(x_ref[...], w1_ref[...], preferred_element_type=jnp.float32)
    h = jnp.maximum(h, 0.0)
    acc_ref[...] += jnp.dot(h.astype(w2_ref.dtype), w2_ref[...],
                            preferred_element_type=jnp.float32)

    @pl.when(hi == pl.num_programs(1) - 1)
    def _():
        o_ref[...] = acc_ref[...].astype(o_ref.dtype)


# ---------------------------------------------------------------------------
# Host-side parameter prep (do this ONCE at parameter-setup time)
# ---------------------------------------------------------------------------

def prepare_weights(w1, w2, *, compute_dtype=None):
    """Pad + transpose PyTorch-layout weights once.

    w1: [H, D_in] (linear1.weight), w2: [D_out, H] (linear2.weight).
    Returns w1t [D_in_p, H_p] and w2t [H_p, D_out_p] (128-lane padded) so the
    kernel runs canonical [M,K]@[K,N] MXU contractions with no relayout.
    """
    H, D_in = w1.shape
    D_out, H2 = w2.shape
    assert H == H2, "incompatible linear1/linear2 shapes"
    if compute_dtype is not None:
        w1 = w1.astype(compute_dtype)
        w2 = w2.astype(compute_dtype)
    D_in_p = _round_up(D_in, 128)
    H_p = _round_up(H, 128)
    D_out_p = _round_up(D_out, 128)
    w1t = jnp.pad(w1.T, ((0, D_in_p - D_in), (0, H_p - H)))
    w2t = jnp.pad(w2.T, ((0, H_p - H), (0, D_out_p - D_out)))
    return dict(w1t=w1t, w2t=w2t, D_in=D_in, H=H, D_out=D_out)


# ---------------------------------------------------------------------------
# Tiling planner
# ---------------------------------------------------------------------------

def _plan(N, D_in_p, H_p, D_out_p, w_item, out_item, max_tm, budget,
          force_h_split):
    n16 = _round_up(max(N, 1), 16)
    tm = min(_round_up(max_tm, 16), n16)
    # Megacore: give both TensorCores a batch tile when the batch is large.
    if _cdiv(n16, tm) < 2 and n16 >= 512:
        tm = _round_up(_cdiv(N, 2), 16)
    tm_floor = min(256, n16)  # don't starve the 256-wide MXU M dimension

    if force_h_split:
        return tm, 128

    def act_bytes(t, h_cols):
        # double-buffered x tile + double-buffered out tile +
        # f32 hidden temp and its compute-dtype cast copy
        return (2 * t * D_in_p * w_item
                + 2 * t * D_out_p * out_item
                + t * h_cols * (4 + w_item))

    resident_w = (D_in_p * H_p + H_p * D_out_p) * w_item  # single-buffered
    t = tm
    while True:
        if resident_w + act_bytes(t, H_p) <= budget:
            return t, None                     # fully weight-resident path
        if t <= tm_floor:
            break
        t = max(tm_floor, _round_up(t // 2, 16))

    # H-reduction fallback: largest TH (multiple of 128, dividing H_p) that fits.
    q = H_p // 128
    for d in range(q, 0, -1):
        if q % d:
            continue
        th = 128 * d
        tiled_w = 2 * (D_in_p * th + th * D_out_p) * w_item  # double-buffered
        acc = tm * D_out_p * 4                               # f32 accumulator
        if tiled_w + acc + act_bytes(tm, th) <= budget or d == 1:
            return tm, th
    # TODO(synk): add a D_in reduction split (pre-ReLU accumulator) if even
    # 128-wide H tiles overflow VMEM for extremely large D_in / D_out.
    return tm, 128


# ---------------------------------------------------------------------------
# Forward pass
# ---------------------------------------------------------------------------

def two_layer_net(x, prepared, *, max_tm=512, force_h_split=False):
    """x: [N, D_in]; prepared = prepare_weights(w1, w2). Returns [N, D_out]."""
    w1t, w2t = prepared["w1t"], prepared["w2t"]
    D_in, D_out = prepared["D_in"], prepared["D_out"]
    N = x.shape[0]
    assert x.shape[1] == D_in
    out_dtype = x.dtype
    compute_dtype = w1t.dtype
    x = x.astype(compute_dtype)

    D_in_p, H_p = w1t.shape
    _, D_out_p = w2t.shape
    w_item = jnp.dtype(compute_dtype).itemsize
    out_item = jnp.dtype(out_dtype).itemsize

    budget, limit_cap = _vmem_budget()
    tm, th = _plan(N, D_in_p, H_p, D_out_p, w_item, out_item, max_tm, budget,
                   force_h_split)

    N_p = _round_up(max(N, tm), tm)
    x_p = jnp.pad(x, ((0, N_p - N), (0, D_in_p - D_in)))

    flops = 2 * N_p * (D_in_p * H_p + H_p * D_out_p)
    bytes_accessed = (N_p * D_in_p * w_item
                      + (D_in_p * H_p + H_p * D_out_p) * w_item
                      + N_p * D_out_p * out_item)
    cost = pl.CostEstimate(flops=flops, transcendentals=0,
                           bytes_accessed=bytes_accessed)

    def build(single_buffer_weights):
        if th is None:
            # Fully weight-resident path: grid over batch tiles only.
            if single_buffer_weights:
                w1_spec = pl.BlockSpec((D_in_p, H_p), lambda i: (0, 0),
                                       pipeline_mode=pl.Buffered(1))
                w2_spec = pl.BlockSpec((H_p, D_out_p), lambda i: (0, 0),
                                       pipeline_mode=pl.Buffered(1))
                w_buf = 1
            else:
                w1_spec = pl.BlockSpec((D_in_p, H_p), lambda i: (0, 0))
                w2_spec = pl.BlockSpec((H_p, D_out_p), lambda i: (0, 0))
                w_buf = 2
            in_specs = [pl.BlockSpec((tm, D_in_p), lambda i: (i, 0)),
                        w1_spec, w2_spec]
            out_specs = pl.BlockSpec((tm, D_out_p), lambda i: (i, 0))
            grid = (N_p // tm,)
            scratch_shapes = []
            kernel = _resident_kernel
            dim_sem = ("parallel",)
            vmem_need = (w_buf * (D_in_p * H_p + H_p * D_out_p) * w_item
                         + 2 * tm * D_in_p * w_item
                         + 2 * tm * D_out_p * out_item
                         + tm * H_p * (4 + w_item))
        else:
            # H-reduction path: weights streamed in H tiles, f32 accumulator.
            in_specs = [
                pl.BlockSpec((tm, D_in_p), lambda i, h: (i, 0)),
                pl.BlockSpec((D_in_p, th), lambda i, h: (0, h)),
                pl.BlockSpec((th, D_out_p), lambda i, h: (h, 0)),
            ]
            out_specs = pl.BlockSpec((tm, D_out_p), lambda i, h: (i, 0))
            grid = (N_p // tm, H_p // th)
            scratch_shapes = [pltpu.VMEM((tm, D_out_p), jnp.float32)]
            kernel = _hsplit_kernel
            dim_sem = ("parallel", "arbitrary")
            vmem_need = (2 * (D_in_p * th + th * D_out_p) * w_item
                         + 2 * tm * D_in_p * w_item
                         + 2 * tm * D_out_p * out_item
                         + tm * D_out_p * 4
                         + tm * th * (4 + w_item))

        vmem_limit = int(min(max(vmem_need + (8 << 20), 32 << 20), limit_cap))
        return pl.pallas_call(
            kernel,
            out_shape=jax.ShapeDtypeStruct((N_p, D_out_p), out_dtype),
            grid=grid,
            in_specs=in_specs,
            out_specs=out_specs,
            scratch_shapes=scratch_shapes,
            compiler_params=pltpu.CompilerParams(
                dimension_semantics=dim_sem,
                vmem_limit_bytes=vmem_limit,
            ),
            cost_estimate=cost,
        )(x_p, w1t, w2t)

    try:
        out_p = build(single_buffer_weights=True)
    except Exception:
        if th is not None:
            raise
        # Fallback if this JAX build rejects pl.Buffered(1) on resident weights.
        out_p = build(single_buffer_weights=False)

    return out_p[:N, :D_out]


if __name__ == "__main__":
    # Shapes implied by the module: x = randn(N, D_in), hidden H, output D_out.
    N, D_in, H, D_out = 8, 32, 64, 16

    key = jax.random.PRNGKey(0)
    kx, k1, k2 = jax.random.split(key, 3)

    x = jax.random.normal(kx, (N, D_in), dtype=jnp.float32)
    # PyTorch nn.Linear weight layout: [out_features, in_features]
    w1 = jax.random.normal(k1, (H, D_in), dtype=jnp.float32) * 0.1
    w2 = jax.random.normal(k2, (D_out, H), dtype=jnp.float32) * 0.1

    y_ref = jnp.maximum(x @ w1.T, 0.0) @ w2.T

    # f32, fully weight-resident path
    prep_f32 = prepare_weights(w1, w2)
    y = two_layer_net(x, prep_f32)
    jax.block_until_ready(y)
    assert y.shape == (N, D_out)
    assert jnp.allclose(y, y_ref, atol=1e-4, rtol=1e-4), \
        float(jnp.max(jnp.abs(y - y_ref)))

    # bf16 fast MXU path (f32 accumulation via preferred_element_type)
    prep_bf16 = prepare_weights(w1, w2, compute_dtype=jnp.bfloat16)
    y_bf16 = two_layer_net(x, prep_bf16)
    jax.block_until_ready(y_bf16)
    assert y_bf16.shape == (N, D_out)
    assert jnp.allclose(y_bf16.astype(jnp.float32), y_ref, atol=5e-2, rtol=5e-2)

    # Exercise the H-reduction fallback (used when weights don't fit in VMEM)
    H2 = 384
    k3, k4 = jax.random.split(k2)
    w1b = jax.random.normal(k3, (H2, D_in), dtype=jnp.float32) * 0.1
    w2b = jax.random.normal(k4, (D_out, H2), dtype=jnp.float32) * 0.1
    y2_ref = jnp.maximum(x @ w1b.T, 0.0) @ w2b.T
    y2 = two_layer_net(x, prepare_weights(w1b, w2b), force_h_split=True)
    jax.block_until_ready(y2)
    assert jnp.allclose(y2, y2_ref, atol=1e-4, rtol=1e-4), \
        float(jnp.max(jnp.abs(y2 - y2_ref)))

    print("KERNEL_OK")
</pallas_src>

<mosaic_0001>
module attributes {stable_mosaic.version = 11 : i64} {
  func.func @_resident_kernel(%arg0: i32, %arg1: memref<16x128xf32, #tpu.memory_space<vmem>>, %arg2: memref<128x128xf32, #tpu.memory_space<vmem>>, %arg3: memref<128x128xf32, #tpu.memory_space<vmem>>, %arg4: memref<16x128xf32, #tpu.memory_space<vmem>>) attributes {dimension_semantics = [#tpu.dimension_semantics<parallel>], iteration_bounds = array<i64: 1>, scalar_prefetch = 0 : i64, scratch_operands = 0 : i64, tpu.core_type = #tpu.core_type<tc>, window_params = [{transform_indices = @transform_0, window_bounds = array<i64: 16, 128>}, {pipeline_mode = #tpu.pipeline_mode<synchronous>, transform_indices = @transform_1, window_bounds = array<i64: 128, 128>}, {pipeline_mode = #tpu.pipeline_mode<synchronous>, transform_indices = @transform_2, window_bounds = array<i64: 128, 128>}, {transform_indices = @transform_3, window_bounds = array<i64: 16, 128>}]} {
    %c0 = arith.constant 0 : index
    %c0_0 = arith.constant 0 : index
    %0 = vector.load %arg1[%c0, %c0_0] : memref<16x128xf32, #tpu.memory_space<vmem>>, vector<16x128xf32>
    %c0_1 = arith.constant 0 : index
    %c0_2 = arith.constant 0 : index
    %1 = vector.load %arg2[%c0_1, %c0_2] : memref<128x128xf32, #tpu.memory_space<vmem>>, vector<128x128xf32>
    %cst = arith.constant dense<0.000000e+00> : vector<16x128xf32>
    %2 = tpu.matmul %0, %1, %cst {dimension_numbers = #tpu.dot_dimension_numbers<[1], [0], [0], [1], [0, 0, 1, 1], [], []>} : vector<16x128xf32>, vector<128x128xf32>, vector<16x128xf32> -> vector<16x128xf32>
    %cst_3 = arith.constant 0.000000e+00 : f32
    %3 = vector.broadcast %cst_3 : f32 to vector<16x128xf32>
    %4 = arith.maximumf %2, %3 : vector<16x128xf32>
    %c0_4 = arith.constant 0 : index
    %c0_5 = arith.constant 0 : index
    %5 = vector.load %arg3[%c0_4, %c0_5] : memref<128x128xf32, #tpu.memory_space<vmem>>, vector<128x128xf32>
    %cst_6 = arith.constant dense<0.000000e+00> : vector<16x128xf32>
    %6 = tpu.matmul %4, %5, %cst_6 {dimension_numbers = #tpu.dot_dimension_numbers<[1], [0], [0], [1], [0, 0, 1, 1], [], []>} : vector<16x128xf32>, vector<128x128xf32>, vector<16x128xf32> -> vector<16x128xf32>
    %c0_7 = arith.constant 0 : index
    %c0_8 = arith.constant 0 : index
    %7 = vector.load %arg4[%c0_7, %c0_8] : memref<16x128xf32, #tpu.memory_space<vmem>>, vector<16x128xf32>
    tpu.vector_store %arg4[%c0_7, %c0_8], %6 {strides = array<i32>} : memref<16x128xf32, #tpu.memory_space<vmem>>, vector<16x128xf32>,
    return
  }
  func.func @transform_0(%arg0: i32) -> (i32, i32) {
    %c0_i32 = arith.constant 0 : i32
    %c0_i32_0 = arith.constant 0 : i32
    return %arg0, %c0_i32 : i32, i32
  }
  func.func @transform_1(%arg0: i32) -> (i32, i32) {
    %c0_i32 = arith.constant 0 : i32
    %c0_i32_0 = arith.constant 0 : i32
    %c0_i32_1 = arith.constant 0 : i32
    return %c0_i32, %c0_i32_0 : i32, i32
  }
  func.func @transform_2(%arg0: i32) -> (i32, i32) {
    %c0_i32 = arith.constant 0 : i32
    %c0_i32_0 = arith.constant 0 : i32
    %c0_i32_1 = arith.constant 0 : i32
    return %c0_i32, %c0_i32_0 : i32, i32
  }
  func.func @transform_3(%arg0: i32) -> (i32, i32) {
    %c0_i32 = arith.constant 0 : i32
    %c0_i32_0 = arith.constant 0 : i32
    return %arg0, %c0_i32 : i32, i32
  }
}

module attributes {stable_mosaic.version = 11 : i64} {
  func.func @_resident_kernel(%arg0: i32, %arg1: memref<16x128xf32, #tpu.memory_space<vmem>>, %arg2: memref<128x128xf32, #tpu.memory_space<vmem>>, %arg3: memref<128x128xf32, #tpu.memory_space<vmem>>, %arg4: memref<16x128xf32, #tpu.memory_space<vmem>>) attributes {dimension_semantics = [#tpu.dimension_semantics<parallel>], iteration_bounds = array<i64: 1>, scalar_prefetch = 0 : i64, scratch_operands = 0 : i64, tpu.core_type = #tpu.core_type<tc>, window_params = [{transform_indices = @transform_0, window_bounds = array<i64: 16, 128>}, {pipeline_mode = #tpu.pipeline_mode<synchronous>, transform_indices = @transform_1, window_bounds = array<i64: 128, 128>}, {pipeline_mode = #tpu.pipeline_mode<synchronous>, transform_indices = @transform_2, window_bounds = array<i64: 128, 128>}, {transform_indices = @transform_3, window_bounds = array<i64: 16, 128>}]} {
    %c0 = arith.constant 0 : index
    %c0_0 = arith.constant 0 : index
    %0 = vector.load %arg1[%c0, %c0_0] : memref<16x128xf32, #tpu.memory_space<vmem>>, vector<16x128xf32>
    %c0_1 = arith.constant 0 : index
    %c0_2 = arith.constant 0 : index
    %1 = vector.load %arg2[%c0_1, %c0_2] : memref<128x128xf32, #tpu.memory_space<vmem>>, vector<128x128xf32>
    %cst = arith.constant dense<0.000000e+00> : vector<16x128xf32>
    %2 = tpu.matmul %0, %1, %cst {dimension_numbers = #tpu.dot_dimension_numbers<[1], [0], [0], [1], [0, 0, 1, 1], [], []>} : vector<16x128xf32>, vector<128x128xf32>, vector<16x128xf32> -> vector<16x128xf32>
    %cst_3 = arith.constant 0.000000e+00 : f32
    %3 = vector.broadcast %cst_3 : f32 to vector<16x128xf32>
    %4 = arith.maximumf %2, %3 : vector<16x128xf32>
    %c0_4 = arith.constant 0 : index
    %c0_5 = arith.constant 0 : index
    %5 = vector.load %arg3[%c0_4, %c0_5] : memref<128x128xf32, #tpu.memory_space<vmem>>, vector<128x128xf32>
    %cst_6 = arith.constant dense<0.000000e+00> : vector<16x128xf32>
    %6 = tpu.matmul %4, %5, %cst_6 {dimension_numbers = #tpu.dot_dimension_numbers<[1], [0], [0], [1], [0, 0, 1, 1], [], []>} : vector<16x128xf32>, vector<128x128xf32>, vector<16x128xf32> -> vector<16x128xf32>
    %c0_7 = arith.constant 0 : index
    %c0_8 = arith.constant 0 : index
    %7 = vector.load %arg4[%c0_7, %c0_8] : memref<16x128xf32, #tpu.memory_space<vmem>>, vector<16x128xf32>
    tpu.vector_store %arg4[%c0_7, %c0_8], %6 {strides = array<i32>} : memref<16x128xf32, #tpu.memory_space<vmem>>, vector<16x128xf32>,
    return
  }
  func.func @transform_0(%arg0: i32) -> (i32, i32) {
    %c0_i32 = arith.constant 0 : i32
    %c0_i32_0 = arith.constant 0 : i32
    return %arg0, %c0_i32 : i32, i32
  }
  func.func @transform_1(%arg0: i32) -> (i32, i32) {
    %c0_i32 = arith.constant 0 : i32
    %c0_i32_0 = arith.constant 0 : i32
    %c0_i32_1 = arith.constant 0 : i32
    return %c0_i32, %c0_i32_0 : i32, i32
  }
  func.func @transform_2(%arg0: i32) -> (i32, i32) {
    %c0_i32 = arith.constant 0 : i32
    %c0_i32_0 = arith.constant 0 : i32
    %c0_i32_1 = arith.constant 0 : i32
    return %c0_i32, %c0_i32_0 : i32, i32
  }
  func.func @transform_3(%arg0: i32) -> (i32, i32) {
    %c0_i32 = arith.constant 0 : i32
    %c0_i32_0 = arith.constant 0 : i32
    return %arg0, %c0_i32 : i32, i32
  }
}

</mosaic_0001>

<llo_original>
// kernel: tpu_custom_call.1
$region0: #{tpu_custom_call.1}
  #allocation0 [shape = 'u32[]', space=smem, size = 0x4, offset = 0x4, fixed_abs, tag = 'smem constant byte address 0x4 - core index']
  #allocation1 [shape = 'u32[144,128]{1,0:T(1,128)}', space=vmem, size = 0x12000, scoped, tag = 'internal scratch']
  %s0 = inlined_call_operand.hbm [shape: f32[16,128], index: 0, kind: input, shape index: {}]
  %s1 = inlined_call_operand.hbm [shape: f32[128,128], index: 1, kind: input, shape index: {}]
  %s2 = inlined_call_operand.hbm [shape: f32[128,128], index: 2, kind: input, shape index: {}]
  %s3 = inlined_call_operand.hbm [shape: f32[16,128], index: 3, kind: output, shape index: {}]
  %s4 = sld [smem:[#allocation0]]
  $region34: #{tpu_custom_call.1} parent=0
    _
  %s6 = ssub.s32 1, %s4
  %s7 = scalar_select 0, %s6, %s4
  $region1: #{tpu_custom_call.1} parent=0
    #allocation2 [shape = 'u8[8192]{0}', space=vmem, size = 0x2000, scoped, tag = 'input window, operand 0, single buffered']
    #allocation3 [shape = 's32[1]{0}', space=sflag, size = 0x4, scoped, tag = 'scoped memory for tpu_custom_call.1']
    #allocation4 [shape = 's32[1]{0}', space=sflag, size = 0x4, scoped, tag = 'scoped memory for tpu_custom_call.1']
    #allocation5 [shape = 'u8[65536]{0}', space=vmem, size = 0x10000, scoped, tag = 'input window, operand 1, single buffered']
    #allocation6 [shape = 's32[1]{0}', space=sflag, size = 0x4, scoped, tag = 'scoped memory for tpu_custom_call.1']
    #allocation7 [shape = 'u8[65536]{0}', space=vmem, size = 0x10000, scoped, tag = 'input window, operand 2, single buffered']
    #allocation8 [shape = 'u8[8192]{0}', space=vmem, size = 0x2000, scoped, tag = 'output window, operand 0, single buffered']
    %8 = vsyncpa [#allocation3], 0
    %9 = vsyncpa [#allocation6], 0
    %10 = vsyncpa [#allocation4], 0
    // Predicated region
    $region2: #{tpu_custom_call.1} parent=1 // pred_check
      _
    $region3: #{tpu_custom_call.1} parent=1 // pred_check_branch
      %12 = sbr.rel (0) target = $region5
    $region4: #{tpu_custom_call.1} parent=1 // pred_region
      %s14 = ssub.s32 256, 256
      %15 = vsyncadd [#allocation3], %s14
      %s16 = sshll.u32 [#allocation2], 4
      %s17 = int_to_ptr.vmem [resolvable:$true] %s16
      %22 = dma.hbm_to_vmem [thread:$0]  %s0, 256, %s17, [#allocation3], 128, 128, 8
    $region5: #{tpu_custom_call.1} parent=1 // pred_fallthru
      _
    // Predicated region
    $region6: #{tpu_custom_call.1} parent=1 // pred_check
      _
    $region7: #{tpu_custom_call.1} parent=1 // pred_check_branch
      %24 = sbr.rel (0) target = $region9
    $region8: #{tpu_custom_call.1} parent=1 // pred_region
      %s26 = ssub.s32 2048, 2048
      %27 = vsyncadd [#allocation6], %s26
      %s28 = sshll.u32 [#allocation5], 4
      %s29 = int_to_ptr.vmem [resolvable:$true] %s28
      %34 = dma.hbm_to_vmem [thread:$0]  %s1, 2048, %s29, [#allocation6], 128, 128, 8
    $region9: #{tpu_custom_call.1} parent=1 // pred_fallthru
      _
    // Predicated region
    $region10: #{tpu_custom_call.1} parent=1 // pred_check
      _
    $region11: #{tpu_custom_call.1} parent=1 // pred_check_branch
      %36 = sbr.rel (0) target = $region13
    $region12: #{tpu_custom_call.1} parent=1 // pred_region
      %s38 = ssub.s32 2048, 2048
      %39 = vsyncadd [#allocation6], %s38
      %s40 = sshll.u32 [#allocation7], 4
      %s41 = int_to_ptr.vmem [resolvable:$true] %s40
      %46 = dma.hbm_to_vmem [thread:$0]  %s2, 2048, %s41, [#allocation6], 128, 128, 8
    $region13: #{tpu_custom_call.1} parent=1 // pred_fallthru
      _
    // Predicated region
    $region14: #{tpu_custom_call.1} parent=1 // pred_check
      _
    $region15: #{tpu_custom_call.1} parent=1 // pred_check_branch
      %48 = sbr.rel (0) target = $region17
    $region16: #{tpu_custom_call.1} parent=1 // pred_region
      %49 = dma.done [#allocation3], 256
    $region17: #{tpu_custom_call.1} parent=1 // pred_fallthru
      _
    // Predicated region
    $region18: #{tpu_custom_call.1} parent=1 // pred_check
      _
    $region19: #{tpu_custom_call.1} parent=1 // pred_check_branch
      %51 = sbr.rel (0) target = $region21
    $region20: #{tpu_custom_call.1} parent=1 // pred_region
      %52 = dma.done [#allocation6], 2048
    $region21: #{tpu_custom_call.1} parent=1 // pred_fallthru
      _
    // Predicated region
    $region22: #{tpu_custom_call.1} parent=1 // pred_check
      _
    $region23: #{tpu_custom_call.1} parent=1 // pred_check_branch
      %54 = sbr.rel (0) target = $region25
    $region24: #{tpu_custom_call.1} parent=1 // pred_region
      %55 = dma.done [#allocation6], 2048
    $region25: #{tpu_custom_call.1} parent=1 // pred_fallthru
      _
    %v56 = vld [vmem:[#allocation2] sm:$0xff]
    %v57 = vld [vmem:[#allocation2 + $0x8] sm:$0xff]
    %v58 = vld [vmem:[#allocation5] sm:$0xff]
    %v59 = vld [vmem:[#allocation5 + $0x8] sm:$0xff]
    %v60 = vld [vmem:[#allocation5 + $0x10] sm:$0xff]
    %v61 = vld [vmem:[#allocation5 + $0x18] sm:$0xff]
    %v62 = vld [vmem:[#allocation5 + $0x20] sm:$0xff]
    %v63 = vld [vmem:[#allocation5 + $0x28] sm:$0xff]
    %v64 = vld [vmem:[#allocation5 + $0x30] sm:$0xff]
    %v65 = vld [vmem:[#allocation5 + $0x38] sm:$0xff]
    %v66 = vld [vmem:[#allocation5 + $0x40] sm:$0xff]
    %v67 = vld [vmem:[#allocation5 + $0x48] sm:$0xff]
    %v68 = vld [vmem:[#allocation5 + $0x50] sm:$0xff]
    %v69 = vld [vmem:[#allocation5 + $0x58] sm:$0xff]
    %v70 = vld [vmem:[#allocation5 + $0x60] sm:$0xff]
    %v71 = vld [vmem:[#allocation5 + $0x68] sm:$0xff]
    %v72 = vld [vmem:[#allocation5 + $0x70] sm:$0xff]
    %v73 = vld [vmem:[#allocation5 + $0x78] sm:$0xff]
    %74 = vmatprep.subr.mxu0 0.0
    %75 = vmatpush1.msra.mxu0 %v58
    %76 = vmatprep.subr.mxu0 0.0
    %77 = vmatpush1.msra.mxu0 %v59
    %78 = vmatprep.subr.mxu0 0.0
    %79 = vmatpush1.msra.mxu0 %v60
    %80 = vmatprep.subr.mxu0 0.0
    %81 = vmatpush1.msra.mxu0 %v61
    %82 = vmatprep.subr.mxu0 0.0
    %83 = vmatpush1.msra.mxu0 %v62
    %84 = vmatprep.subr.mxu0 0.0
    %85 = vmatpush1.msra.mxu0 %v63
    %86 = vmatprep.subr.mxu0 0.0
    %87 = vmatpush1.msra.mxu0 %v64
    %88 = vmatprep.subr.mxu0 0.0
    %89 = vmatpush1.msra.mxu0 %v65
    %90 = vmatprep.subr.mxu0 0.0
    %91 = vmatpush1.msra.mxu0 %v66
    %92 = vmatprep.subr.mxu0 0.0
    %93 = vmatpush1.msra.mxu0 %v67
    %94 = vmatprep.subr.mxu0 0.0
    %95 = vmatpush1.msra.mxu0 %v68
    %96 = vmatprep.subr.mxu0 0.0
    %97 = vmatpush1.msra.mxu0 %v69
    %98 = vmatprep.subr.mxu0 0.0
    %99 = vmatpush1.msra.mxu0 %v70
    %100 = vmatprep.subr.mxu0 0.0
    %101 = vmatpush1.msra.mxu0 %v71
    %102 = vmatprep.subr.mxu0 0.0
    %103 = vmatpush1.msra.mxu0 %v72
    %104 = vmatprep.subr.mxu0 0.0
    %105 = vmatpush1.msra.mxu0 %v73
    %106 = vmatprep.subr.mxu0 0.0
    %107 = vmatpush1.msra.mxu0 0.0
    %108 = vmatprep.subr.mxu0 0.0
    %109 = vmatpush1.msra.mxu0 0.0
    %110 = vmatprep.subr.mxu0 0.0
    %111 = vmatpush1.msra.mxu0 0.0
    %112 = vmatprep.subr.mxu0 0.0
    %113 = vmatpush1.msra.mxu0 0.0
    %114 = vmatprep.subr.mxu0 0.0
    %115 = vmatpush1.msra.mxu0 0.0
    %116 = vmatprep.subr.mxu0 0.0
    %117 = vmatpush1.msra.mxu0 0.0
    %118 = vmatprep.subr.mxu0 0.0
    %119 = vmatpush1.msra.mxu0 0.0
    %120 = vmatprep.subr.mxu0 0.0
    %121 = vmatpush1.msra.mxu0 0.0
    %122 = vmatprep.subr.mxu0 0.0
    %123 = vmatpush1.msra.mxu0 0.0
    %124 = vmatprep.subr.mxu0 0.0
    %125 = vmatpush1.msra.mxu0 0.0
    %126 = vmatprep.subr.mxu0 0.0
    %127 = vmatpush1.msra.mxu0 0.0
    %128 = vmatprep.subr.mxu0 0.0
    %129 = vmatpush1.msra.mxu0 0.0
    %130 = vmatprep.subr.mxu0 0.0
    %131 = vmatpush1.msra.mxu0 0.0
    %132 = vmatprep.subr.mxu0 0.0
    %133 = vmatpush1.msra.mxu0 0.0
    %134 = vmatprep.subr.mxu0 0.0
    %135 = vmatpush1.msra.mxu0 0.0
    %136 = vmatprep.subr.mxu0 0.0
    %137 = vmatpush1.msra.mxu0 0.0
    %138 = vmatprep.mubr.f32.mxu0 0.0
    %139 = vmatmul.mubr.f32.gmra.mrb[0].mxu0 %v56
    %v140 = vpop.f32.mrb[0].mxu0
    %v141 = vadd.f32 0.0, %v140
    %v142 = vpop.f32.mrb[0].mxu0
    %143 = vmatprep.mubr.f32.mxu0 0.0
    %144 = vmatmul.mubr.f32.gmra.mrb[0].mxu0 %v57
    %v145 = vpop.f32.mrb[0].mxu0
    %v146 = vadd.f32 0.0, %v145
    %v147 = vpop.f32.mrb[0].mxu0
    %148 = vdwg.mxu0
    %v149 = vmax.f32 %v141, 0.0
    %v150 = vmax.f32 %v146, 0.0
    %v151 = vld [vmem:[#allocation7] sm:$0xff]
    %v152 = vld [vmem:[#allocation7 + $0x8] sm:$0xff]
    %v153 = vld [vmem:[#allocation7 + $0x10] sm:$0xff]
    %v154 = vld [vmem:[#allocation7 + $0x18] sm:$0xff]
    %v155 = vld [vmem:[#allocation7 + $0x20] sm:$0xff]
    %v156 = vld [vmem:[#allocation7 + $0x28] sm:$0xff]
    %v157 = vld [vmem:[#allocation7 + $0x30] sm:$0xff]
    %v158 = vld [vmem:[#allocation7 + $0x38] sm:$0xff]
    %v159 = vld [vmem:[#allocation7 + $0x40] sm:$0xff]
    %v160 = vld [vmem:[#allocation7 + $0x48] sm:$0xff]
    %v161 = vld [vmem:[#allocation7 + $0x50] sm:$0xff]
    %v162 = vld [vmem:[#allocation7 + $0x58] sm:$0xff]
    %v163 = vld [vmem:[#allocation7 + $0x60] sm:$0xff]
    %v164 = vld [vmem:[#allocation7 + $0x68] sm:$0xff]
    %v165 = vld [vmem:[#allocation7 + $0x70] sm:$0xff]
    %v166 = vld [vmem:[#allocation7 + $0x78] sm:$0xff]
    %167 = vmatprep.subr.mxu0 0.0
    %168 = vmatpush1.msra.mxu0 %v151
    %169 = vmatprep.subr.mxu0 0.0
    %170 = vmatpush1.msra.mxu0 %v152
    %171 = vmatprep.subr.mxu0 0.0
    %172 = vmatpush1.msra.mxu0 %v153
    %173 = vmatprep.subr.mxu0 0.0
    %174 = vmatpush1.msra.mxu0 %v154
    %175 = vmatprep.subr.mxu0 0.0
    %176 = vmatpush1.msra.mxu0 %v155
    %177 = vmatprep.subr.mxu0 0.0
    %178 = vmatpush1.msra.mxu0 %v156
    %179 = vmatprep.subr.mxu0 0.0
    %180 = vmatpush1.msra.mxu0 %v157
    %181 = vmatprep.subr.mxu0 0.0
    %182 = vmatpush1.msra.mxu0 %v158
    %183 = vmatprep.subr.mxu0 0.0
    %184 = vmatpush1.msra.mxu0 %v159
    %185 = vmatprep.subr.mxu0 0.0
    %186 = vmatpush1.msra.mxu0 %v160
    %187 = vmatprep.subr.mxu0 0.0
    %188 = vmatpush1.msra.mxu0 %v161
    %189 = vmatprep.subr.mxu0 0.0
    %190 = vmatpush1.msra.mxu0 %v162
    %191 = vmatprep.subr.mxu0 0.0
    %192 = vmatpush1.msra.mxu0 %v163
    %193 = vmatprep.subr.mxu0 0.0
    %194 = vmatpush1.msra.mxu0 %v164
    %195 = vmatprep.subr.mxu0 0.0
    %196 = vmatpush1.msra.mxu0 %v165
    %197 = vmatprep.subr.mxu0 0.0
    %198 = vmatpush1.msra.mxu0 %v166
    %199 = vmatprep.subr.mxu0 0.0
    %200 = vmatpush1.msra.mxu0 0.0
    %201 = vmatprep.subr.mxu0 0.0
    %202 = vmatpush1.msra.mxu0 0.0
    %203 = vmatprep.subr.mxu0 0.0
    %204 = vmatpush1.msra.mxu0 0.0
    %205 = vmatprep.subr.mxu0 0.0
    %206 = vmatpush1.msra.mxu0 0.0
    %207 = vmatprep.subr.mxu0 0.0
    %208 = vmatpush1.msra.mxu0 0.0
    %209 = vmatprep.subr.mxu0 0.0
    %210 = vmatpush1.msra.mxu0 0.0
    %211 = vmatprep.subr.mxu0 0.0
    %212 = vmatpush1.msra.mxu0 0.0
    %213 = vmatprep.subr.mxu0 0.0
    %214 = vmatpush1.msra.mxu0 0.0
    %215 = vmatprep.subr.mxu0 0.0
    %216 = vmatpush1.msra.mxu0 0.0
    %217 = vmatprep.subr.mxu0 0.0
    %218 = vmatpush1.msra.mxu0 0.0
    %219 = vmatprep.subr.mxu0 0.0
    %220 = vmatpush1.msra.mxu0 0.0
    %221 = vmatprep.subr.mxu0 0.0
    %222 = vmatpush1.msra.mxu0 0.0
    %223 = vmatprep.subr.mxu0 0.0
    %224 = vmatpush1.msra.mxu0 0.0
    %225 = vmatprep.subr.mxu0 0.0
    %226 = vmatpush1.msra.mxu0 0.0
    %227 = vmatprep.subr.mxu0 0.0
    %228 = vmatpush1.msra.mxu0 0.0
    %229 = vmatprep.subr.mxu0 0.0
    %230 = vmatpush1.msra.mxu0 0.0
    %231 = vmatprep.mubr.f32.mxu0 0.0
    %232 = vmatmul.mubr.f32.gmra.mrb[0].mxu0 %v149
    %v233 = vpop.f32.mrb[0].mxu0
    %v234 = vadd.f32 0.0, %v233
    %v235 = vpop.f32.mrb[0].mxu0
    %236 = vmatprep.mubr.f32.mxu0 0.0
    %237 = vmatmul.mubr.f32.gmra.mrb[0].mxu0 %v150
    %v238 = vpop.f32.mrb[0].mxu0
    %v239 = vadd.f32 0.0, %v238
    %v240 = vpop.f32.mrb[0].mxu0
    %241 = vdwg.mxu0
    %242 = vst [vmem:[#allocation8] sm:$0xff] %v234
    %243 = vst [vmem:[#allocation8 + $0x8] sm:$0xff] %v239
    // Predicated region
    $region26: #{tpu_custom_call.1} parent=1 // pred_check
      _
    $region27: #{tpu_custom_call.1} parent=1 // pred_check_branch
      %245 = sbr.rel (0) target = $region29
    $region28: #{tpu_custom_call.1} parent=1 // pred_region
      %s247 = ssub.s32 256, 256
      %248 = vsyncadd [#allocation4], %s247
      %s249 = sshll.u32 [#allocation8], 4
      %s250 = int_to_ptr.vmem [resolvable:$true] %s249
      %255 = dma.vmem_to_hbm [thread:$0]  %s250, 256, %s3, [#allocation4], 128, 128, 8
    $region29: #{tpu_custom_call.1} parent=1 // pred_fallthru
      _
    // Predicated region
    $region30: #{tpu_custom_call.1} parent=1 // pred_check
      _
    $region31: #{tpu_custom_call.1} parent=1 // pred_check_branch
      %257 = sbr.rel (0) target = $region33
    $region32: #{tpu_custom_call.1} parent=1 // pred_region
      %258 = dma.done [#allocation4], 256
    $region33: #{tpu_custom_call.1} parent=1 // pred_fallthru
      _
    %259 = vsyncpa [#allocation3], 1
    %260 = vsyncpa [#allocation6], 1
    %261 = vsyncpa [#allocation4], 1

// kernel: tpu_custom_call.1
$region0: #{tpu_custom_call.1}
  #allocation0 [shape = 'u32[]', space=smem, size = 0x4, offset = 0x4, fixed_abs, tag = 'smem constant byte address 0x4 - core index']
  #allocation1 [shape = 'u32[144,128]{1,0:T(1,128)}', space=vmem, size = 0x12000, scoped, tag = 'internal scratch']
  %s0 = inlined_call_operand.hbm [shape: f32[16,128], index: 0, kind: input, shape index: {}]
  %s1 = inlined_call_operand.hbm [shape: f32[128,128], index: 1, kind: input, shape index: {}]
  %s2 = inlined_call_operand.hbm [shape: f32[128,128], index: 2, kind: input, shape index: {}]
  %s3 = inlined_call_operand.hbm [shape: f32[16,128], index: 3, kind: output, shape index: {}]
  %s4 = sld [smem:[#allocation0]]
  $region34: #{tpu_custom_call.1} parent=0
    _
  %s6 = ssub.s32 1, %s4
  %s7 = scalar_select 0, %s6, %s4
  $region1: #{tpu_custom_call.1} parent=0
    #allocation2 [shape = 'u8[8192]{0}', space=vmem, size = 0x2000, scoped, tag = 'input window, operand 0, single buffered']
    #allocation3 [shape = 's32[1]{0}', space=sflag, size = 0x4, scoped, tag = 'scoped memory for tpu_custom_call.1']
    #allocation4 [shape = 's32[1]{0}', space=sflag, size = 0x4, scoped, tag = 'scoped memory for tpu_custom_call.1']
    #allocation5 [shape = 'u8[65536]{0}', space=vmem, size = 0x10000, scoped, tag = 'input window, operand 1, single buffered']
    #allocation6 [shape = 's32[1]{0}', space=sflag, size = 0x4, scoped, tag = 'scoped memory for tpu_custom_call.1']
    #allocation7 [shape = 'u8[65536]{0}', space=vmem, size = 0x10000, scoped, tag = 'input window, operand 2, single buffered']
    #allocation8 [shape = 'u8[8192]{0}', space=vmem, size = 0x2000, scoped, tag = 'output window, operand 0, single buffered']
    %8 = vsyncpa [#allocation3], 0
    %9 = vsyncpa [#allocation6], 0
    %10 = vsyncpa [#allocation4], 0
    // Predicated region
    $region2: #{tpu_custom_call.1} parent=1 // pred_check
      _
    $region3: #{tpu_custom_call.1} parent=1 // pred_check_branch
      %12 = sbr.rel (0) target = $region5
    $region4: #{tpu_custom_call.1} parent=1 // pred_region
      %s14 = ssub.s32 256, 256
      %15 = vsyncadd [#allocation3], %s14
      %s16 = sshll.u32 [#allocation2], 4
      %s17 = int_to_ptr.vmem [resolvable:$true] %s16
      %22 = dma.hbm_to_vmem [thread:$0]  %s0, 256, %s17, [#allocation3], 128, 128, 8
    $region5: #{tpu_custom_call.1} parent=1 // pred_fallthru
      _
    // Predicated region
    $region6: #{tpu_custom_call.1} parent=1 // pred_check
      _
    $region7: #{tpu_custom_call.1} parent=1 // pred_check_branch
      %24 = sbr.rel (0) target = $region9
    $region8: #{tpu_custom_call.1} parent=1 // pred_region
      %s26 = ssub.s32 2048, 2048
      %27 = vsyncadd [#allocation6], %s26
      %s28 = sshll.u32 [#allocation5], 4
      %s29 = int_to_ptr.vmem [resolvable:$true] %s28
      %34 = dma.hbm_to_vmem [thread:$0]  %s1, 2048, %s29, [#allocation6], 128, 128, 8
    $region9: #{tpu_custom_call.1} parent=1 // pred_fallthru
      _
    // Predicated region
    $region10: #{tpu_custom_call.1} parent=1 // pred_check
      _
    $region11: #{tpu_custom_call.1} parent=1 // pred_check_branch
      %36 = sbr.rel (0) target = $region13
    $region12: #{tpu_custom_call.1} parent=1 // pred_region
      %s38 = ssub.s32 2048, 2048
      %39 = vsyncadd [#allocation6], %s38
      %s40 = sshll.u32 [#allocation7], 4
      %s41 = int_to_ptr.vmem [resolvable:$true] %s40
      %46 = dma.hbm_to_vmem [thread:$0]  %s2, 2048, %s41, [#allocation6], 128, 128, 8
    $region13: #{tpu_custom_call.1} parent=1 // pred_fallthru
      _
    // Predicated region
    $region14: #{tpu_custom_call.1} parent=1 // pred_check
      _
    $region15: #{tpu_custom_call.1} parent=1 // pred_check_branch
      %48 = sbr.rel (0) target = $region17
    $region16: #{tpu_custom_call.1} parent=1 // pred_region
      %49 = dma.done [#allocation3], 256
    $region17: #{tpu_custom_call.1} parent=1 // pred_fallthru
      _
    // Predicated region
    $region18: #{tpu_custom_call.1} parent=1 // pred_check
      _
    $region19: #{tpu_custom_call.1} parent=1 // pred_check_branch
      %51 = sbr.rel (0) target = $region21
    $region20: #{tpu_custom_call.1} parent=1 // pred_region
      %52 = dma.done [#allocation6], 2048
    $region21: #{tpu_custom_call.1} parent=1 // pred_fallthru
      _
    // Predicated region
    $region22: #{tpu_custom_call.1} parent=1 // pred_check
      _
    $region23: #{tpu_custom_call.1} parent=1 // pred_check_branch
      %54 = sbr.rel (0) target = $region25
    $region24: #{tpu_custom_call.1} parent=1 // pred_region
      %55 = dma.done [#allocation6], 2048
    $region25: #{tpu_custom_call.1} parent=1 // pred_fallthru
      _
    %v56 = vld [vmem:[#allocation2] sm:$0xff]
    %v57 = vld [vmem:[#allocation2 + $0x8] sm:$0xff]
    %v58 = vld [vmem:[#allocation5] sm:$0xff]
    %v59 = vld [vmem:[#allocation5 + $0x8] sm:$0xff]
    %v60 = vld [vmem:[#allocation5 + $0x10] sm:$0xff]
    %v61 = vld [vmem:[#allocation5 + $0x18] sm:$0xff]
    %v62 = vld [vmem:[#allocation5 + $0x20] sm:$0xff]
    %v63 = vld [vmem:[#allocation5 + $0x28] sm:$0xff]
    %v64 = vld [vmem:[#allocation5 + $0x30] sm:$0xff]
    %v65 = vld [vmem:[#allocation5 + $0x38] sm:$0xff]
    %v66 = vld [vmem:[#allocation5 + $0x40] sm:$0xff]
    %v67 = vld [vmem:[#allocation5 + $0x48] sm:$0xff]
    %v68 = vld [vmem:[#allocation5 + $0x50] sm:$0xff]
    %v69 = vld [vmem:[#allocation5 + $0x58] sm:$0xff]
    %v70 = vld [vmem:[#allocation5 + $0x60] sm:$0xff]
    %v71 = vld [vmem:[#allocation5 + $0x68] sm:$0xff]
    %v72 = vld [vmem:[#allocation5 + $0x70] sm:$0xff]
    %v73 = vld [vmem:[#allocation5 + $0x78] sm:$0xff]
    %74 = vmatprep.subr.mxu0 0.0
    %75 = vmatpush1.msra.mxu0 %v58
    %76 = vmatprep.subr.mxu0 0.0
    %77 = vmatpush1.msra.mxu0 %v59
    %78 = vmatprep.subr.mxu0 0.0
    %79 = vmatpush1.msra.mxu0 %v60
    %80 = vmatprep.subr.mxu0 0.0
    %81 = vmatpush1.msra.mxu0 %v61
    %82 = vmatprep.subr.mxu0 0.0
    %83 = vmatpush1.msra.mxu0 %v62
    %84 = vmatprep.subr.mxu0 0.0
    %85 = vmatpush1.msra.mxu0 %v63
    %86 = vmatprep.subr.mxu0 0.0
    %87 = vmatpush1.msra.mxu0 %v64
    %88 = vmatprep.subr.mxu0 0.0
    %89 = vmatpush1.msra.mxu0 %v65
    %90 = vmatprep.subr.mxu0 0.0
    %91 = vmatpush1.msra.mxu0 %v66
    %92 = vmatprep.subr.mxu0 0.0
    %93 = vmatpush1.msra.mxu0 %v67
    %94 = vmatprep.subr.mxu0 0.0
    %95 = vmatpush1.msra.mxu0 %v68
    %96 = vmatprep.subr.mxu0 0.0
    %97 = vmatpush1.msra.mxu0 %v69
    %98 = vmatprep.subr.mxu0 0.0
    %99 = vmatpush1.msra.mxu0 %v70
    %100 = vmatprep.subr.mxu0 0.0
    %101 = vmatpush1.msra.mxu0 %v71
    %102 = vmatprep.subr.mxu0 0.0
    %103 = vmatpush1.msra.mxu0 %v72
    %104 = vmatprep.subr.mxu0 0.0
    %105 = vmatpush1.msra.mxu0 %v73
    %106 = vmatprep.subr.mxu0 0.0
    %107 = vmatpush1.msra.mxu0 0.0
    %108 = vmatprep.subr.mxu0 0.0
    %109 = vmatpush1.msra.mxu0 0.0
    %110 = vmatprep.subr.mxu0 0.0
    %111 = vmatpush1.msra.mxu0 0.0
    %112 = vmatprep.subr.mxu0 0.0
    %113 = vmatpush1.msra.mxu0 0.0
    %114 = vmatprep.subr.mxu0 0.0
    %115 = vmatpush1.msra.mxu0 0.0
    %116 = vmatprep.subr.mxu0 0.0
    %117 = vmatpush1.msra.mxu0 0.0
    %118 = vmatprep.subr.mxu0 0.0
    %119 = vmatpush1.msra.mxu0 0.0
    %120 = vmatprep.subr.mxu0 0.0
    %121 = vmatpush1.msra.mxu0 0.0
    %122 = vmatprep.subr.mxu0 0.0
    %123 = vmatpush1.msra.mxu0 0.0
    %124 = vmatprep.subr.mxu0 0.0
    %125 = vmatpush1.msra.mxu0 0.0
    %126 = vmatprep.subr.mxu0 0.0
    %127 = vmatpush1.msra.mxu0 0.0
    %128 = vmatprep.subr.mxu0 0.0
    %129 = vmatpush1.msra.mxu0 0.0
    %130 = vmatprep.subr.mxu0 0.0
    %131 = vmatpush1.msra.mxu0 0.0
    %132 = vmatprep.subr.mxu0 0.0
    %133 = vmatpush1.msra.mxu0 0.0
    %134 = vmatprep.subr.mxu0 0.0
    %135 = vmatpush1.msra.mxu0 0.0
    %136 = vmatprep.subr.mxu0 0.0
    %137 = vmatpush1.msra.mxu0 0.0
    %138 = vmatprep.mubr.f32.mxu0 0.0
    %139 = vmatmul.mubr.f32.gmra.mrb[0].mxu0 %v56
    %v140 = vpop.f32.mrb[0].mxu0
    %v141 = vadd.f32 0.0, %v140
    %v142 = vpop.f32.mrb[0].mxu0
    %143 = vmatprep.mubr.f32.mxu0 0.0
    %144 = vmatmul.mubr.f32.gmra.mrb[0].mxu0 %v57
    %v145 = vpop.f32.mrb[0].mxu0
    %v146 = vadd.f32 0.0, %v145
    %v147 = vpop.f32.mrb[0].mxu0
    %148 = vdwg.mxu0
    %v149 = vmax.f32 %v141, 0.0
    %v150 = vmax.f32 %v146, 0.0
    %v151 = vld [vmem:[#allocation7] sm:$0xff]
    %v152 = vld [vmem:[#allocation7 + $0x8] sm:$0xff]
    %v153 = vld [vmem:[#allocation7 + $0x10] sm:$0xff]
    %v154 = vld [vmem:[#allocation7 + $0x18] sm:$0xff]
    %v155 = vld [vmem:[#allocation7 + $0x20] sm:$0xff]
    %v156 = vld [vmem:[#allocation7 + $0x28] sm:$0xff]
    %v157 = vld [vmem:[#allocation7 + $0x30] sm:$0xff]
    %v158 = vld [vmem:[#allocation7 + $0x38] sm:$0xff]
    %v159 = vld [vmem:[#allocation7 + $0x40] sm:$0xff]
    %v160 = vld [vmem:[#allocation7 + $0x48] sm:$0xff]
    %v161 = vld [vmem:[#allocation7 + $0x50] sm:$0xff]
    %v162 = vld [vmem:[#allocation7 + $0x58] sm:$0xff]
    %v163 = vld [vmem:[#allocation7 + $0x60] sm:$0xff]
    %v164 = vld [vmem:[#allocation7 + $0x68] sm:$0xff]
    %v165 = vld [vmem:[#allocation7 + $0x70] sm:$0xff]
    %v166 = vld [vmem:[#allocation7 + $0x78] sm:$0xff]
    %167 = vmatprep.subr.mxu0 0.0
    %168 = vmatpush1.msra.mxu0 %v151
    %169 = vmatprep.subr.mxu0 0.0
    %170 = vmatpush1.msra.mxu0 %v152
    %171 = vmatprep.subr.mxu0 0.0
    %172 = vmatpush1.msra.mxu0 %v153
    %173 = vmatprep.subr.mxu0 0.0
    %174 = vmatpush1.msra.mxu0 %v154
    %175 = vmatprep.subr.mxu0 0.0
    %176 = vmatpush1.msra.mxu0 %v155
    %177 = vmatprep.subr.mxu0 0.0
    %178 = vmatpush1.msra.mxu0 %v156
    %179 = vmatprep.subr.mxu0 0.0
    %180 = vmatpush1.msra.mxu0 %v157
    %181 = vmatprep.subr.mxu0 0.0
    %182 = vmatpush1.msra.mxu0 %v158
    %183 = vmatprep.subr.mxu0 0.0
    %184 = vmatpush1.msra.mxu0 %v159
    %185 = vmatprep.subr.mxu0 0.0
    %186 = vmatpush1.msra.mxu0 %v160
    %187 = vmatprep.subr.mxu0 0.0
    %188 = vmatpush1.msra.mxu0 %v161
    %189 = vmatprep.subr.mxu0 0.0
    %190 = vmatpush1.msra.mxu0 %v162
    %191 = vmatprep.subr.mxu0 0.0
    %192 = vmatpush1.msra.mxu0 %v163
    %193 = vmatprep.subr.mxu0 0.0
    %194 = vmatpush1.msra.mxu0 %v164
    %195 = vmatprep.subr.mxu0 0.0
    %196 = vmatpush1.msra.mxu0 %v165
    %197 = vmatprep.subr.mxu0 0.0
    %198 = vmatpush1.msra.mxu0 %v166
    %199 = vmatprep.subr.mxu0 0.0
    %200 = vmatpush1.msra.mxu0 0.0
    %201 = vmatprep.subr.mxu0 0.0
    %202 = vmatpush1.msra.mxu0 0.0
    %203 = vmatprep.subr.mxu0 0.0
    %204 = vmatpush1.msra.mxu0 0.0
    %205 = vmatprep.subr.mxu0 0.0
    %206 = vmatpush1.msra.mxu0 0.0
    %207 = vmatprep.subr.mxu0 0.0
    %208 = vmatpush1.msra.mxu0 0.0
    %209 = vmatprep.subr.mxu0 0.0
    %210 = vmatpush1.msra.mxu0 0.0
    %211 = vmatprep.subr.mxu0 0.0
    %212 = vmatpush1.msra.mxu0 0.0
    %213 = vmatprep.subr.mxu0 0.0
    %214 = vmatpush1.msra.mxu0 0.0
    %215 = vmatprep.subr.mxu0 0.0
    %216 = vmatpush1.msra.mxu0 0.0
    %217 = vmatprep.subr.mxu0 0.0
    %218 = vmatpush1.msra.mxu0 0.0
    %219 = vmatprep.subr.mxu0 0.0
    %220 = vmatpush1.msra.mxu0 0.0
    %221 = vmatprep.subr.mxu0 0.0
    %222 = vmatpush1.msra.mxu0 0.0
    %223 = vmatprep.subr.mxu0 0.0
    %224 = vmatpush1.msra.mxu0 0.0
    %225 = vmatprep.subr.mxu0 0.0
    %226 = vmatpush1.msra.mxu0 0.0
    %227 = vmatprep.subr.mxu0 0.0
    %228 = vmatpush1.msra.mxu0 0.0
    %229 = vmatprep.subr.mxu0 0.0
    %230 = vmatpush1.msra.mxu0 0.0
    %231 = vmatprep.mubr.f32.mxu0 0.0
    %232 = vmatmul.mubr.f32.gmra.mrb[0].mxu0 %v149
    %v233 = vpop.f32.mrb[0].mxu0
    %v234 = vadd.f32 0.0, %v233
    %v235 = vpop.f32.mrb[0].mxu0
    %236 = vmatprep.mubr.f32.mxu0 0.0
    %237 = vmatmul.mubr.f32.gmra.mrb[0].mxu0 %v150
    %v238 = vpop.f32.mrb[0].mxu0
    %v239 = vadd.f32 0.0, %v238
    %v240 = vpop.f32.mrb[0].mxu0
    %241 = vdwg.mxu0
    %242 = vst [vmem:[#allocation8] sm:$0xff] %v234
    %243 = vst [vmem:[#allocation8 + $0x8] sm:$0xff] %v239
    // Predicated region
    $region26: #{tpu_custom_call.1} parent=1 // pred_check
      _
    $region27: #{tpu_custom_call.1} parent=1 // pred_check_branch
      %245 = sbr.rel (0) target = $region29
    $region28: #{tpu_custom_call.1} parent=1 // pred_region
      %s247 = ssub.s32 256, 256
      %248 = vsyncadd [#allocation4], %s247
      %s249 = sshll.u32 [#allocation8], 4
      %s250 = int_to_ptr.vmem [resolvable:$true] %s249
      %255 = dma.vmem_to_hbm [thread:$0]  %s250, 256, %s3, [#allocation4], 128, 128, 8
    $region29: #{tpu_custom_call.1} parent=1 // pred_fallthru
      _
    // Predicated region
    $region30: #{tpu_custom_call.1} parent=1 // pred_check
      _
    $region31: #{tpu_custom_call.1} parent=1 // pred_check_branch
      %257 = sbr.rel (0) target = $region33
    $region32: #{tpu_custom_call.1} parent=1 // pred_region
      %258 = dma.done [#allocation4], 256
    $region33: #{tpu_custom_call.1} parent=1 // pred_fallthru
      _
    %259 = vsyncpa [#allocation3], 1
    %260 = vsyncpa [#allocation6], 1
    %261 = vsyncpa [#allocation4], 1

</llo_original>
